<compile_context>
chip_gen: v7x
topology: tpu7x:2x2x1
jax: 0.10.0
libtpu: 0.0.40
codegen_flags: <defaults>
</compile_context>

<pallas_src>
import functools

import jax
import jax.numpy as jnp
from jax.experimental import pallas as pl
from jax.experimental.pallas import tpu as pltpu

TILE_B = 256   # batch rows per grid step (multiple of 8)
LANE = 128     # lane-dense padded width for every feature dimension


def ffnn_kernel(x_ref, w1_ref, b1_ref, w2_ref, b2_ref, w3_ref, b3_ref, o_ref):
    x = x_ref[...]

    # fc1 + TeLU(alpha=0.15)
    h1 = jnp.dot(x, w1_ref[...], preferred_element_type=jnp.float32) + b1_ref[...]
    h1 = jnp.where(h1 >= 0.0, h1, 0.15 * (jnp.exp(jnp.minimum(h1, 0.0)) - 1.0))

    # fc2 + TeLU(alpha=0.1)
    h2 = jnp.dot(h1, w2_ref[...], preferred_element_type=jnp.float32) + b2_ref[...]
    h2 = jnp.where(h2 >= 0.0, h2, 0.1 * (jnp.exp(jnp.minimum(h2, 0.0)) - 1.0))

    # fc3 (logits live in the first 2 lanes of a lane-dense 128-wide output slab)
    o_ref[...] = jnp.dot(h2, w3_ref[...], preferred_element_type=jnp.float32) + b3_ref[...]


def pad_params(params):
    """Zero-pad all linear layers to lane-dense (128-wide) shapes. Done once."""
    w1, b1, w2, b2, w3, b3 = params

    def pad2(a, rows, cols):
        return jnp.zeros((rows, cols), a.dtype).at[: a.shape[0], : a.shape[1]].set(a)

    w1p = pad2(w1, LANE, LANE)   # (input_size, 32)  -> (128, 128)
    b1p = pad2(b1, 1, LANE)      # (1, 32)           -> (1, 128)
    w2p = pad2(w2, LANE, LANE)   # (32, 64)          -> (128, 128)
    b2p = pad2(b2, 1, LANE)      # (1, 64)           -> (1, 128)
    w3p = pad2(w3, LANE, LANE)   # (64, 2)           -> (128, 128)
    b3p = pad2(b3, 1, LANE)      # (1, 2)            -> (1, 128)
    return (w1p, b1p, w2p, b2p, w3p, b3p)


@functools.partial(jax.jit, static_argnames=("num_classes",))
def ffnn_forward(x, padded_params, num_classes=2):
    """x: (B, input_size) float32 -> (B, num_classes) float32."""
    w1, b1, w2, b2, w3, b3 = padded_params
    B, F = x.shape

    # Pad batch to a multiple of TILE_B and features to the lane-dense width.
    Bp = pl.cdiv(B, TILE_B) * TILE_B
    x_pad = jnp.zeros((Bp, LANE), x.dtype).at[:B, :F].set(x)

    grid = (Bp // TILE_B,)

    x_spec = pl.BlockSpec((TILE_B, LANE), lambda i: (i, 0))
    out_spec = pl.BlockSpec((TILE_B, LANE), lambda i: (i, 0))
    # Weights / biases: full arrays, same block for every grid step (stay resident).
    w_spec = pl.BlockSpec((LANE, LANE), lambda i: (0, 0))
    b_spec = pl.BlockSpec((1, LANE), lambda i: (0, 0))

    cost = pl.CostEstimate(
        flops=2 * B * (16 * 32 + 32 * 64 + 64 * 2),
        transcendentals=B * (32 + 64),
        bytes_accessed=B * (LANE + LANE) * 4 + 3 * LANE * LANE * 4,
    )

    out_pad = pl.pallas_call(
        ffnn_kernel,
        out_shape=jax.ShapeDtypeStruct((Bp, LANE), jnp.float32),
        grid_spec=pltpu.PrefetchScalarGridSpec(
            num_scalar_prefetch=0,
            grid=grid,
            in_specs=[x_spec, w_spec, b_spec, w_spec, b_spec, w_spec, b_spec],
            out_specs=out_spec,
        ),
        compiler_params=pltpu.CompilerParams(
            dimension_semantics=("parallel",),
        ),
        cost_estimate=cost,
    )(x_pad, w1, b1, w2, b2, w3, b3)

    return out_pad[:B, :num_classes]


def init_params(key, input_size):
    """Deterministic init mirroring nn.Linear shapes (weights stored transposed)."""
    ks = jax.random.split(key, 6)

    def linear(kw, kb, fan_in, fan_out):
        bound = 1.0 / jnp.sqrt(fan_in)
        # PyTorch stores (out, in); we store (in, out) so the kernel does x @ W.
        w = jax.random.uniform(kw, (fan_in, fan_out), jnp.float32, -bound, bound)
        b = jax.random.uniform(kb, (1, fan_out), jnp.float32, -bound, bound)
        return w, b

    w1, b1 = linear(ks[0], ks[1], input_size, 32)
    w2, b2 = linear(ks[2], ks[3], 32, 64)
    w3, b3 = linear(ks[4], ks[5], 64, 2)
    return (w1, b1, w2, b2, w3, b3)


if __name__ == "__main__":
    key = jax.random.PRNGKey(0)
    k_x, k_p = jax.random.split(key)

    batch = 8          # tiny demo batch (real win is at thousands+ of rows)
    input_size = 16    # tabular stroke-prediction feature count

    x = jax.random.normal(k_x, (batch, input_size), dtype=jnp.float32)
    params = init_params(k_p, input_size)
    padded_params = pad_params(params)   # one-time lane-dense padding

    out = ffnn_forward(x, padded_params)
    jax.block_until_ready(out)

    # Pure-JAX reference check against the *unpadded* params.
    w1, b1, w2, b2, w3, b3 = params
    h1 = x @ w1 + b1
    h1 = jnp.where(h1 >= 0, h1, 0.15 * (jnp.exp(h1) - 1.0))
    h2 = h1 @ w2 + b2
    h2 = jnp.where(h2 >= 0, h2, 0.1 * (jnp.exp(h2) - 1.0))
    ref = h2 @ w3 + b3

    assert out.shape == (batch, 2)
    assert jnp.allclose(out, ref, atol=1e-5, rtol=1e-5)

    print("KERNEL_OK")
</pallas_src>

<mosaic_0001>
module attributes {stable_mosaic.version = 11 : i64} {
  func.func @ffnn_kernel(%arg0: i32, %arg1: memref<256x128xf32, #tpu.memory_space<vmem>>, %arg2: memref<128x128xf32, #tpu.memory_space<vmem>>, %arg3: memref<1x128xf32, #tpu.memory_space<vmem>>, %arg4: memref<128x128xf32, #tpu.memory_space<vmem>>, %arg5: memref<1x128xf32, #tpu.memory_space<vmem>>, %arg6: memref<128x128xf32, #tpu.memory_space<vmem>>, %arg7: memref<1x128xf32, #tpu.memory_space<vmem>>, %arg8: memref<256x128xf32, #tpu.memory_space<vmem>>) attributes {dimension_semantics = [#tpu.dimension_semantics<parallel>], iteration_bounds = array<i64: 1>, scalar_prefetch = 0 : i64, scratch_operands = 0 : i64, tpu.core_type = #tpu.core_type<tc>, window_params = [{transform_indices = @transform_0, window_bounds = array<i64: 256, 128>}, {pipeline_mode = #tpu.pipeline_mode<synchronous>, transform_indices = @transform_1, window_bounds = array<i64: 128, 128>}, {pipeline_mode = #tpu.pipeline_mode<synchronous>, transform_indices = @transform_2, window_bounds = array<i64: 1, 128>}, {pipeline_mode = #tpu.pipeline_mode<synchronous>, transform_indices = @transform_3, window_bounds = array<i64: 128, 128>}, {pipeline_mode = #tpu.pipeline_mode<synchronous>, transform_indices = @transform_4, window_bounds = array<i64: 1, 128>}, {pipeline_mode = #tpu.pipeline_mode<synchronous>, transform_indices = @transform_5, window_bounds = array<i64: 128, 128>}, {pipeline_mode = #tpu.pipeline_mode<synchronous>, transform_indices = @transform_6, window_bounds = array<i64: 1, 128>}, {transform_indices = @transform_7, window_bounds = array<i64: 256, 128>}]} {
    %c0 = arith.constant 0 : index
    %c0_0 = arith.constant 0 : index
    %0 = vector.load %arg1[%c0, %c0_0] : memref<256x128xf32, #tpu.memory_space<vmem>>, vector<256x128xf32>
    %c0_1 = arith.constant 0 : index
    %c0_2 = arith.constant 0 : index
    %1 = vector.load %arg2[%c0_1, %c0_2] : memref<128x128xf32, #tpu.memory_space<vmem>>, vector<128x128xf32>
    %cst = arith.constant dense<0.000000e+00> : vector<256x128xf32>
    %2 = tpu.matmul %0, %1, %cst {dimension_numbers = #tpu.dot_dimension_numbers<[1], [0], [0], [1], [0, 0, 1, 1], [], []>} : vector<256x128xf32>, vector<128x128xf32>, vector<256x128xf32> -> vector<256x128xf32>
    %c0_3 = arith.constant 0 : index
    %c0_4 = arith.constant 0 : index
    %3 = vector.load %arg3[%c0_3, %c0_4] : memref<1x128xf32, #tpu.memory_space<vmem>>, vector<1x128xf32>
    %4 = vector.broadcast %3 : vector<1x128xf32> to vector<256x128xf32>
    %5 = arith.addf %2, %4 : vector<256x128xf32>
    %cst_5 = arith.constant 0.000000e+00 : f32
    %6 = vector.broadcast %cst_5 : f32 to vector<256x128xf32>
    %7 = arith.cmpf oge, %5, %6 : vector<256x128xf32>
    %cst_6 = arith.constant 0.000000e+00 : f32
    %8 = vector.broadcast %cst_6 : f32 to vector<256x128xf32>
    %9 = arith.minimumf %5, %8 : vector<256x128xf32>
    %10 = math.exp %9 : vector<256x128xf32>
    %cst_7 = arith.constant 1.000000e+00 : f32
    %11 = vector.broadcast %cst_7 : f32 to vector<256x128xf32>
    %12 = arith.subf %10, %11 : vector<256x128xf32>
    %cst_8 = arith.constant 1.500000e-01 : f32
    %13 = vector.broadcast %cst_8 : f32 to vector<256x128xf32>
    %14 = arith.mulf %13, %12 : vector<256x128xf32>
    %15 = arith.select %7, %5, %14 : vector<256x128xi1>, vector<256x128xf32>
    %c0_9 = arith.constant 0 : index
    %c0_10 = arith.constant 0 : index
    %16 = vector.load %arg4[%c0_9, %c0_10] : memref<128x128xf32, #tpu.memory_space<vmem>>, vector<128x128xf32>
    %cst_11 = arith.constant dense<0.000000e+00> : vector<256x128xf32>
    %17 = tpu.matmul %15, %16, %cst_11 {dimension_numbers = #tpu.dot_dimension_numbers<[1], [0], [0], [1], [0, 0, 1, 1], [], []>} : vector<256x128xf32>, vector<128x128xf32>, vector<256x128xf32> -> vector<256x128xf32>
    %c0_12 = arith.constant 0 : index
    %c0_13 = arith.constant 0 : index
    %18 = vector.load %arg5[%c0_12, %c0_13] : memref<1x128xf32, #tpu.memory_space<vmem>>, vector<1x128xf32>
    %19 = vector.broadcast %18 : vector<1x128xf32> to vector<256x128xf32>
    %20 = arith.addf %17, %19 : vector<256x128xf32>
    %cst_14 = arith.constant 0.000000e+00 : f32
    %21 = vector.broadcast %cst_14 : f32 to vector<256x128xf32>
    %22 = arith.cmpf oge, %20, %21 : vector<256x128xf32>
    %cst_15 = arith.constant 0.000000e+00 : f32
    %23 = vector.broadcast %cst_15 : f32 to vector<256x128xf32>
    %24 = arith.minimumf %20, %23 : vector<256x128xf32>
    %25 = math.exp %24 : vector<256x128xf32>
    %cst_16 = arith.constant 1.000000e+00 : f32
    %26 = vector.broadcast %cst_16 : f32 to vector<256x128xf32>
    %27 = arith.subf %25, %26 : vector<256x128xf32>
    %cst_17 = arith.constant 1.000000e-01 : f32
    %28 = vector.broadcast %cst_17 : f32 to vector<256x128xf32>
    %29 = arith.mulf %28, %27 : vector<256x128xf32>
    %30 = arith.select %22, %20, %29 : vector<256x128xi1>, vector<256x128xf32>
    %c0_18 = arith.constant 0 : index
    %c0_19 = arith.constant 0 : index
    %31 = vector.load %arg6[%c0_18, %c0_19] : memref<128x128xf32, #tpu.memory_space<vmem>>, vector<128x128xf32>
    %cst_20 = arith.constant dense<0.000000e+00> : vector<256x128xf32>
    %32 = tpu.matmul %30, %31, %cst_20 {dimension_numbers = #tpu.dot_dimension_numbers<[1], [0], [0], [1], [0, 0, 1, 1], [], []>} : vector<256x128xf32>, vector<128x128xf32>, vector<256x128xf32> -> vector<256x128xf32>
    %c0_21 = arith.constant 0 : index
    %c0_22 = arith.constant 0 : index
    %33 = vector.load %arg7[%c0_21, %c0_22] : memref<1x128xf32, #tpu.memory_space<vmem>>, vector<1x128xf32>
    %34 = vector.broadcast %33 : vector<1x128xf32> to vector<256x128xf32>
    %35 = arith.addf %32, %34 : vector<256x128xf32>
    %c0_23 = arith.constant 0 : index
    %c0_24 = arith.constant 0 : index
    %36 = vector.load %arg8[%c0_23, %c0_24] : memref<256x128xf32, #tpu.memory_space<vmem>>, vector<256x128xf32>
    tpu.vector_store %arg8[%c0_23, %c0_24], %35 {strides = array<i32>} : memref<256x128xf32, #tpu.memory_space<vmem>>, vector<256x128xf32>,
    return
  }
  func.func @transform_0(%arg0: i32) -> (i32, i32) {
    %c0_i32 = arith.constant 0 : i32
    %c0_i32_0 = arith.constant 0 : i32
    return %arg0, %c0_i32 : i32, i32
  }
  func.func @transform_1(%arg0: i32) -> (i32, i32) {
    %c0_i32 = arith.constant 0 : i32
    %c0_i32_0 = arith.constant 0 : i32
    %c0_i32_1 = arith.constant 0 : i32
    return %c0_i32, %c0_i32_0 : i32, i32
  }
  func.func @transform_2(%arg0: i32) -> (i32, i32) {
    %c0_i32 = arith.constant 0 : i32
    %c0_i32_0 = arith.constant 0 : i32
    %c0_i32_1 = arith.constant 0 : i32
    return %c0_i32, %c0_i32_0 : i32, i32
  }
  func.func @transform_3(%arg0: i32) -> (i32, i32) {
    %c0_i32 = arith.constant 0 : i32
    %c0_i32_0 = arith.constant 0 : i32
    %c0_i32_1 = arith.constant 0 : i32
    return %c0_i32, %c0_i32_0 : i32, i32
  }
  func.func @transform_4(%arg0: i32) -> (i32, i32) {
    %c0_i32 = arith.constant 0 : i32
    %c0_i32_0 = arith.constant 0 : i32
    %c0_i32_1 = arith.constant 0 : i32
    return %c0_i32, %c0_i32_0 : i32, i32
  }
  func.func @transform_5(%arg0: i32) -> (i32, i32) {
    %c0_i32 = arith.constant 0 : i32
    %c0_i32_0 = arith.constant 0 : i32
    %c0_i32_1 = arith.constant 0 : i32
    return %c0_i32, %c0_i32_0 : i32, i32
  }
  func.func @transform_6(%arg0: i32) -> (i32, i32) {
    %c0_i32 = arith.constant 0 : i32
    %c0_i32_0 = arith.constant 0 : i32
    %c0_i32_1 = arith.constant 0 : i32
    return %c0_i32, %c0_i32_0 : i32, i32
  }
  func.func @transform_7(%arg0: i32) -> (i32, i32) {
    %c0_i32 = arith.constant 0 : i32
    %c0_i32_0 = arith.constant 0 : i32
    return %arg0, %c0_i32 : i32, i32
  }
}

</mosaic_0001>

<llo_original>
// kernel: ffnn_forward.1
$region0: #{ffnn_forward.1}
  #allocation0 [shape = 'u32[]', space=smem, size = 0x4, offset = 0x4, fixed_abs, tag = 'smem constant byte address 0x4 - core index']
  #allocation1 [shape = 'u32[144,128]{1,0:T(1,128)}', space=vmem, size = 0x12000, scoped, tag = 'internal scratch']
  %s0 = inlined_call_operand.vmem [shape: f32[256,128], index: 0, kind: input, shape index: {}]
  %s1 = inlined_call_operand.vmem [shape: f32[128,128], index: 1, kind: input, shape index: {}]
  %s2 = inlined_call_operand.vmem [shape: f32[1,128], index: 2, kind: input, shape index: {}]
  %s3 = inlined_call_operand.vmem [shape: f32[128,128], index: 3, kind: input, shape index: {}]
  %s4 = inlined_call_operand.vmem [shape: f32[1,128], index: 4, kind: input, shape index: {}]
  %s5 = inlined_call_operand.hbm [shape: f32[128,128], index: 5, kind: input, shape index: {}]
  %s6 = inlined_call_operand.vmem [shape: f32[1,128], index: 6, kind: input, shape index: {}]
  %s7 = inlined_call_operand.vmem [shape: f32[256,128], index: 7, kind: output, shape index: {}]
  %s8 = sld [smem:[#allocation0]]
  $region42: #{ffnn_forward.1} parent=0
    _
  %s10 = ssub.s32 1, %s8
  %s11 = scalar_select 0, %s10, %s8
  $region1: #{ffnn_forward.1} parent=0
    #allocation2 [shape = 'u8[65536]{0}', space=vmem, size = 0x10000, scoped, tag = 'input window, operand 5, single buffered']
    #allocation3 [shape = 's32[1]{0}', space=sflag, size = 0x4, scoped, tag = 'scoped memory for ffnn_forward.1']
    %12 = vsyncpa [#allocation3], 0
    // Predicated region
    $region2: #{ffnn_forward.1} parent=1 // pred_check
      _
    $region3: #{ffnn_forward.1} parent=1 // pred_check_branch
      %14 = sbr.rel (0) target = $region5
    $region4: #{ffnn_forward.1} parent=1 // pred_region
      _
    $region5: #{ffnn_forward.1} parent=1 // pred_fallthru
      _
    // Predicated region
    $region6: #{ffnn_forward.1} parent=1 // pred_check
      _
    $region7: #{ffnn_forward.1} parent=1 // pred_check_branch
      %16 = sbr.rel (0) target = $region9
    $region8: #{ffnn_forward.1} parent=1 // pred_region
      _
    $region9: #{ffnn_forward.1} parent=1 // pred_fallthru
      _
    // Predicated region
    $region10: #{ffnn_forward.1} parent=1 // pred_check
      _
    $region11: #{ffnn_forward.1} parent=1 // pred_check_branch
      %18 = sbr.rel (0) target = $region13
    $region12: #{ffnn_forward.1} parent=1 // pred_region
      _
    $region13: #{ffnn_forward.1} parent=1 // pred_fallthru
      _
    // Predicated region
    $region14: #{ffnn_forward.1} parent=1 // pred_check
      _
    $region15: #{ffnn_forward.1} parent=1 // pred_check_branch
      %20 = sbr.rel (0) target = $region17
    $region16: #{ffnn_forward.1} parent=1 // pred_region
      _
    $region17: #{ffnn_forward.1} parent=1 // pred_fallthru
      _
    // Predicated region
    $region18: #{ffnn_forward.1} parent=1 // pred_check
      _
    $region19: #{ffnn_forward.1} parent=1 // pred_check_branch
      %22 = sbr.rel (0) target = $region21
    $region20: #{ffnn_forward.1} parent=1 // pred_region
      _
    $region21: #{ffnn_forward.1} parent=1 // pred_fallthru
      _
    // Predicated region
    $region22: #{ffnn_forward.1} parent=1 // pred_check
      _
    $region23: #{ffnn_forward.1} parent=1 // pred_check_branch
      %24 = sbr.rel (0) target = $region25
    $region24: #{ffnn_forward.1} parent=1 // pred_region
      %s26 = ssub.s32 2048, 2048
      %27 = vsyncadd [#allocation3], %s26
      %s28 = sshll.u32 [#allocation2], 4
      %s29 = int_to_ptr.vmem [resolvable:$true] %s28
      %34 = dma.hbm_to_vmem [thread:$0]  %s5, 2048, %s29, [#allocation3], 128, 128, 8
    $region25: #{ffnn_forward.1} parent=1 // pred_fallthru
      _
    // Predicated region
    $region26: #{ffnn_forward.1} parent=1 // pred_check
      _
    $region27: #{ffnn_forward.1} parent=1 // pred_check_branch
      %36 = sbr.rel (0) target = $region29
    $region28: #{ffnn_forward.1} parent=1 // pred_region
      _
    $region29: #{ffnn_forward.1} parent=1 // pred_fallthru
      _
    // Predicated region
    $region30: #{ffnn_forward.1} parent=1 // pred_check
      _
    $region31: #{ffnn_forward.1} parent=1 // pred_check_branch
      %38 = sbr.rel (0) target = $region33
    $region32: #{ffnn_forward.1} parent=1 // pred_region
      %39 = dma.done [#allocation3], 2048
    $region33: #{ffnn_forward.1} parent=1 // pred_fallthru
      _
    %v40 = vld [vmem:[%s0] sm:$0xff]
    %v41 = vld [vmem:[%s0 + $0x8] sm:$0xff]
    %v42 = vld [vmem:[%s0 + $0x10] sm:$0xff]
    %v43 = vld [vmem:[%s0 + $0x18] sm:$0xff]
    %v44 = vld [vmem:[%s0 + $0x20] sm:$0xff]
    %v45 = vld [vmem:[%s0 + $0x28] sm:$0xff]
    %v46 = vld [vmem:[%s0 + $0x30] sm:$0xff]
    %v47 = vld [vmem:[%s0 + $0x38] sm:$0xff]
    %v48 = vld [vmem:[%s0 + $0x40] sm:$0xff]
    %v49 = vld [vmem:[%s0 + $0x48] sm:$0xff]
    %v50 = vld [vmem:[%s0 + $0x50] sm:$0xff]
    %v51 = vld [vmem:[%s0 + $0x58] sm:$0xff]
    %v52 = vld [vmem:[%s0 + $0x60] sm:$0xff]
    %v53 = vld [vmem:[%s0 + $0x68] sm:$0xff]
    %v54 = vld [vmem:[%s0 + $0x70] sm:$0xff]
    %v55 = vld [vmem:[%s0 + $0x78] sm:$0xff]
    %v56 = vld [vmem:[%s0 + $0x80] sm:$0xff]
    %v57 = vld [vmem:[%s0 + $0x88] sm:$0xff]
    %v58 = vld [vmem:[%s0 + $0x90] sm:$0xff]
    %v59 = vld [vmem:[%s0 + $0x98] sm:$0xff]
    %v60 = vld [vmem:[%s0 + $0xa0] sm:$0xff]
    %v61 = vld [vmem:[%s0 + $0xa8] sm:$0xff]
    %v62 = vld [vmem:[%s0 + $0xb0] sm:$0xff]
    %v63 = vld [vmem:[%s0 + $0xb8] sm:$0xff]
    %v64 = vld [vmem:[%s0 + $0xc0] sm:$0xff]
    %v65 = vld [vmem:[%s0 + $0xc8] sm:$0xff]
    %v66 = vld [vmem:[%s0 + $0xd0] sm:$0xff]
    %v67 = vld [vmem:[%s0 + $0xd8] sm:$0xff]
    %v68 = vld [vmem:[%s0 + $0xe0] sm:$0xff]
    %v69 = vld [vmem:[%s0 + $0xe8] sm:$0xff]
    %v70 = vld [vmem:[%s0 + $0xf0] sm:$0xff]
    %v71 = vld [vmem:[%s0 + $0xf8] sm:$0xff]
    %v72 = vld [vmem:[%s1] sm:$0xff]
    %v73 = vld [vmem:[%s1 + $0x8] sm:$0xff]
    %v74 = vld [vmem:[%s1 + $0x10] sm:$0xff]
    %v75 = vld [vmem:[%s1 + $0x18] sm:$0xff]
    %v76 = vld [vmem:[%s1 + $0x20] sm:$0xff]
    %v77 = vld [vmem:[%s1 + $0x28] sm:$0xff]
    %v78 = vld [vmem:[%s1 + $0x30] sm:$0xff]
    %v79 = vld [vmem:[%s1 + $0x38] sm:$0xff]
    %v80 = vld [vmem:[%s1 + $0x40] sm:$0xff]
    %v81 = vld [vmem:[%s1 + $0x48] sm:$0xff]
    %v82 = vld [vmem:[%s1 + $0x50] sm:$0xff]
    %v83 = vld [vmem:[%s1 + $0x58] sm:$0xff]
    %v84 = vld [vmem:[%s1 + $0x60] sm:$0xff]
    %v85 = vld [vmem:[%s1 + $0x68] sm:$0xff]
    %v86 = vld [vmem:[%s1 + $0x70] sm:$0xff]
    %v87 = vld [vmem:[%s1 + $0x78] sm:$0xff]
    %v88 = vld [vmem:[%s2] sm:$0x1]
    %v90 = vlaneseq
    %v91 = vshrl.u32 %v90, 7
    %v92 = vsub.s32 0, %v91
    %v93 = vrot.slane %v88, %v92
    %95 = vmatprep.subr.mxu0 0.0
    %96 = vmatpush1.msra.mxu0 %v72
    %97 = vmatprep.subr.mxu0 0.0
    %98 = vmatpush1.msra.mxu0 %v73
    %99 = vmatprep.subr.mxu0 0.0
    %100 = vmatpush1.msra.mxu0 %v74
    %101 = vmatprep.subr.mxu0 0.0
    %102 = vmatpush1.msra.mxu0 %v75
    %103 = vmatprep.subr.mxu0 0.0
    %104 = vmatpush1.msra.mxu0 %v76
    %105 = vmatprep.subr.mxu0 0.0
    %106 = vmatpush1.msra.mxu0 %v77
    %107 = vmatprep.subr.mxu0 0.0
    %108 = vmatpush1.msra.mxu0 %v78
    %109 = vmatprep.subr.mxu0 0.0
    %110 = vmatpush1.msra.mxu0 %v79
    %111 = vmatprep.subr.mxu0 0.0
    %112 = vmatpush1.msra.mxu0 %v80
    %113 = vmatprep.subr.mxu0 0.0
    %114 = vmatpush1.msra.mxu0 %v81
    %115 = vmatprep.subr.mxu0 0.0
    %116 = vmatpush1.msra.mxu0 %v82
    %117 = vmatprep.subr.mxu0 0.0
    %118 = vmatpush1.msra.mxu0 %v83
    %119 = vmatprep.subr.mxu0 0.0
    %120 = vmatpush1.msra.mxu0 %v84
    %121 = vmatprep.subr.mxu0 0.0
    %122 = vmatpush1.msra.mxu0 %v85
    %123 = vmatprep.subr.mxu0 0.0
    %124 = vmatpush1.msra.mxu0 %v86
    %125 = vmatprep.subr.mxu0 0.0
    %126 = vmatpush1.msra.mxu0 %v87
    %127 = vmatprep.subr.mxu0 0.0
    %128 = vmatpush1.msra.mxu0 0.0
    %129 = vmatprep.subr.mxu0 0.0
    %130 = vmatpush1.msra.mxu0 0.0
    %131 = vmatprep.subr.mxu0 0.0
    %132 = vmatpush1.msra.mxu0 0.0
    %133 = vmatprep.subr.mxu0 0.0
    %134 = vmatpush1.msra.mxu0 0.0
    %135 = vmatprep.subr.mxu0 0.0
    %136 = vmatpush1.msra.mxu0 0.0
    %137 = vmatprep.subr.mxu0 0.0
    %138 = vmatpush1.msra.mxu0 0.0
    %139 = vmatprep.subr.mxu0 0.0
    %140 = vmatpush1.msra.mxu0 0.0
    %141 = vmatprep.subr.mxu0 0.0
    %142 = vmatpush1.msra.mxu0 0.0
    %143 = vmatprep.subr.mxu0 0.0
    %144 = vmatpush1.msra.mxu0 0.0
    %145 = vmatprep.subr.mxu0 0.0
    %146 = vmatpush1.msra.mxu0 0.0
    %147 = vmatprep.subr.mxu0 0.0
    %148 = vmatpush1.msra.mxu0 0.0
    %149 = vmatprep.subr.mxu0 0.0
    %150 = vmatpush1.msra.mxu0 0.0
    %151 = vmatprep.subr.mxu0 0.0
    %152 = vmatpush1.msra.mxu0 0.0
    %153 = vmatprep.subr.mxu0 0.0
    %154 = vmatpush1.msra.mxu0 0.0
    %155 = vmatprep.subr.mxu0 0.0
    %156 = vmatpush1.msra.mxu0 0.0
    %157 = vmatprep.subr.mxu0 0.0
    %158 = vmatpush1.msra.mxu0 0.0
    %159 = vmatprep.mubr.f32.mxu0 0.0
    %160 = vmatmul.mubr.f32.gmra.mrb[0].mxu0 %v40
    %v161 = vpop.f32.mrb[0].mxu0
    %v162 = vadd.f32 %v93, %v161
    %v163 = vpop.f32.mrb[0].mxu0
    %164 = vmatprep.mubr.f32.mxu0 0.0
    %165 = vmatmul.mubr.f32.gmra.mrb[0].mxu0 %v41
    %v166 = vpop.f32.mrb[0].mxu0
    %v167 = vadd.f32 %v93, %v166
    %v168 = vpop.f32.mrb[0].mxu0
    %169 = vmatprep.mubr.f32.mxu0 0.0
    %170 = vmatmul.mubr.f32.gmra.mrb[0].mxu0 %v42
    %v171 = vpop.f32.mrb[0].mxu0
    %v172 = vadd.f32 %v93, %v171
    %v173 = vpop.f32.mrb[0].mxu0
    %174 = vmatprep.mubr.f32.mxu0 0.0
    %175 = vmatmul.mubr.f32.gmra.mrb[0].mxu0 %v43
    %v176 = vpop.f32.mrb[0].mxu0
    %v177 = vadd.f32 %v93, %v176
    %v178 = vpop.f32.mrb[0].mxu0
    %179 = vmatprep.mubr.f32.mxu0 0.0
    %180 = vmatmul.mubr.f32.gmra.mrb[0].mxu0 %v44
    %v181 = vpop.f32.mrb[0].mxu0
    %v182 = vadd.f32 %v93, %v181
    %v183 = vpop.f32.mrb[0].mxu0
    %184 = vmatprep.mubr.f32.mxu0 0.0
    %185 = vmatmul.mubr.f32.gmra.mrb[0].mxu0 %v45
    %v186 = vpop.f32.mrb[0].mxu0
    %v187 = vadd.f32 %v93, %v186
    %v188 = vpop.f32.mrb[0].mxu0
    %189 = vmatprep.mubr.f32.mxu0 0.0
    %190 = vmatmul.mubr.f32.gmra.mrb[0].mxu0 %v46
    %v191 = vpop.f32.mrb[0].mxu0
    %v192 = vadd.f32 %v93, %v191
    %v193 = vpop.f32.mrb[0].mxu0
    %194 = vmatprep.mubr.f32.mxu0 0.0
    %195 = vmatmul.mubr.f32.gmra.mrb[0].mxu0 %v47
    %v196 = vpop.f32.mrb[0].mxu0
    %v197 = vadd.f32 %v93, %v196
    %v198 = vpop.f32.mrb[0].mxu0
    %199 = vmatprep.mubr.f32.mxu0 0.0
    %200 = vmatmul.mubr.f32.gmra.mrb[0].mxu0 %v48
    %v201 = vpop.f32.mrb[0].mxu0
    %v202 = vadd.f32 %v93, %v201
    %v203 = vpop.f32.mrb[0].mxu0
    %204 = vmatprep.mubr.f32.mxu0 0.0
    %205 = vmatmul.mubr.f32.gmra.mrb[0].mxu0 %v49
    %v206 = vpop.f32.mrb[0].mxu0
    %v207 = vadd.f32 %v93, %v206
    %v208 = vpop.f32.mrb[0].mxu0
    %209 = vmatprep.mubr.f32.mxu0 0.0
    %210 = vmatmul.mubr.f32.gmra.mrb[0].mxu0 %v50
    %v211 = vpop.f32.mrb[0].mxu0
    %v212 = vadd.f32 %v93, %v211
    %v213 = vpop.f32.mrb[0].mxu0
    %214 = vmatprep.mubr.f32.mxu0 0.0
    %215 = vmatmul.mubr.f32.gmra.mrb[0].mxu0 %v51
    %v216 = vpop.f32.mrb[0].mxu0
    %v217 = vadd.f32 %v93, %v216
    %v218 = vpop.f32.mrb[0].mxu0
    %219 = vmatprep.mubr.f32.mxu0 0.0
    %220 = vmatmul.mubr.f32.gmra.mrb[0].mxu0 %v52
    %v221 = vpop.f32.mrb[0].mxu0
    %v222 = vadd.f32 %v93, %v221
    %v223 = vpop.f32.mrb[0].mxu0
    %224 = vmatprep.mubr.f32.mxu0 0.0
    %225 = vmatmul.mubr.f32.gmra.mrb[0].mxu0 %v53
    %v226 = vpop.f32.mrb[0].mxu0
    %v227 = vadd.f32 %v93, %v226
    %v228 = vpop.f32.mrb[0].mxu0
    %229 = vmatprep.mubr.f32.mxu0 0.0
    %230 = vmatmul.mubr.f32.gmra.mrb[0].mxu0 %v54
    %v231 = vpop.f32.mrb[0].mxu0
    %v232 = vadd.f32 %v93, %v231
    %v233 = vpop.f32.mrb[0].mxu0
    %234 = vmatprep.mubr.f32.mxu0 0.0
    %235 = vmatmul.mubr.f32.gmra.mrb[0].mxu0 %v55
    %v236 = vpop.f32.mrb[0].mxu0
    %v237 = vadd.f32 %v93, %v236
    %v238 = vpop.f32.mrb[0].mxu0
    %239 = vmatprep.mubr.f32.mxu0 0.0
    %240 = vmatmul.mubr.f32.gmra.mrb[0].mxu0 %v56
    %v241 = vpop.f32.mrb[0].mxu0
    %v242 = vadd.f32 %v93, %v241
    %v243 = vpop.f32.mrb[0].mxu0
    %244 = vmatprep.mubr.f32.mxu0 0.0
    %245 = vmatmul.mubr.f32.gmra.mrb[0].mxu0 %v57
    %v246 = vpop.f32.mrb[0].mxu0
    %v247 = vadd.f32 %v93, %v246
    %v248 = vpop.f32.mrb[0].mxu0
    %249 = vmatprep.mubr.f32.mxu0 0.0
    %250 = vmatmul.mubr.f32.gmra.mrb[0].mxu0 %v58
    %v251 = vpop.f32.mrb[0].mxu0
    %v252 = vadd.f32 %v93, %v251
    %v253 = vpop.f32.mrb[0].mxu0
    %254 = vmatprep.mubr.f32.mxu0 0.0
    %255 = vmatmul.mubr.f32.gmra.mrb[0].mxu0 %v59
    %v256 = vpop.f32.mrb[0].mxu0
    %v257 = vadd.f32 %v93, %v256
    %v258 = vpop.f32.mrb[0].mxu0
    %259 = vmatprep.mubr.f32.mxu0 0.0
    %260 = vmatmul.mubr.f32.gmra.mrb[0].mxu0 %v60
    %v261 = vpop.f32.mrb[0].mxu0
    %v262 = vadd.f32 %v93, %v261
    %v263 = vpop.f32.mrb[0].mxu0
    %264 = vmatprep.mubr.f32.mxu0 0.0
    %265 = vmatmul.mubr.f32.gmra.mrb[0].mxu0 %v61
    %v266 = vpop.f32.mrb[0].mxu0
    %v267 = vadd.f32 %v93, %v266
    %v268 = vpop.f32.mrb[0].mxu0
    %269 = vmatprep.mubr.f32.mxu0 0.0
    %270 = vmatmul.mubr.f32.gmra.mrb[0].mxu0 %v62
    %v271 = vpop.f32.mrb[0].mxu0
    %v272 = vadd.f32 %v93, %v271
    %v273 = vpop.f32.mrb[0].mxu0
    %274 = vmatprep.mubr.f32.mxu0 0.0
    %275 = vmatmul.mubr.f32.gmra.mrb[0].mxu0 %v63
    %v276 = vpop.f32.mrb[0].mxu0
    %v277 = vadd.f32 %v93, %v276
    %v278 = vpop.f32.mrb[0].mxu0
    %279 = vmatprep.mubr.f32.mxu0 0.0
    %280 = vmatmul.mubr.f32.gmra.mrb[0].mxu0 %v64
    %v281 = vpop.f32.mrb[0].mxu0
    %v282 = vadd.f32 %v93, %v281
    %v283 = vpop.f32.mrb[0].mxu0
    %284 = vmatprep.mubr.f32.mxu0 0.0
    %285 = vmatmul.mubr.f32.gmra.mrb[0].mxu0 %v65
    %v286 = vpop.f32.mrb[0].mxu0
    %v287 = vadd.f32 %v93, %v286
    %v288 = vpop.f32.mrb[0].mxu0
    %289 = vmatprep.mubr.f32.mxu0 0.0
    %290 = vmatmul.mubr.f32.gmra.mrb[0].mxu0 %v66
    %v291 = vpop.f32.mrb[0].mxu0
    %v292 = vadd.f32 %v93, %v291
    %v293 = vpop.f32.mrb[0].mxu0
    %294 = vmatprep.mubr.f32.mxu0 0.0
    %295 = vmatmul.mubr.f32.gmra.mrb[0].mxu0 %v67
    %v296 = vpop.f32.mrb[0].mxu0
    %v297 = vadd.f32 %v93, %v296
    %v298 = vpop.f32.mrb[0].mxu0
    %299 = vmatprep.mubr.f32.mxu0 0.0
    %300 = vmatmul.mubr.f32.gmra.mrb[0].mxu0 %v68
    %v301 = vpop.f32.mrb[0].mxu0
    %v302 = vadd.f32 %v93, %v301
    %v303 = vpop.f32.mrb[0].mxu0
    %304 = vmatprep.mubr.f32.mxu0 0.0
    %305 = vmatmul.mubr.f32.gmra.mrb[0].mxu0 %v69
    %v306 = vpop.f32.mrb[0].mxu0
    %v307 = vadd.f32 %v93, %v306
    %v308 = vpop.f32.mrb[0].mxu0
    %309 = vmatprep.mubr.f32.mxu0 0.0
    %310 = vmatmul.mubr.f32.gmra.mrb[0].mxu0 %v70
    %v311 = vpop.f32.mrb[0].mxu0
    %v312 = vadd.f32 %v93, %v311
    %v313 = vpop.f32.mrb[0].mxu0
    %314 = vmatprep.mubr.f32.mxu0 0.0
    %315 = vmatmul.mubr.f32.gmra.mrb[0].mxu0 %v71
    %v316 = vpop.f32.mrb[0].mxu0
    %v317 = vadd.f32 %v93, %v316
    %v318 = vpop.f32.mrb[0].mxu0
    %319 = vdwg.mxu0
    %vm320 = vcmp.ge.f32.partialorder %v162, 0.0
    %vm321 = vcmp.ge.f32.partialorder %v167, 0.0
    %vm322 = vcmp.ge.f32.partialorder %v172, 0.0
    %vm323 = vcmp.ge.f32.partialorder %v177, 0.0
    %vm324 = vcmp.ge.f32.partialorder %v182, 0.0
    %vm325 = vcmp.ge.f32.partialorder %v187, 0.0
    %vm326 = vcmp.ge.f32.partialorder %v192, 0.0
    %vm327 = vcmp.ge.f32.partialorder %v197, 0.0
    %vm328 = vcmp.ge.f32.partialorder %v202, 0.0
    %vm329 = vcmp.ge.f32.partialorder %v207, 0.0
    %vm330 = vcmp.ge.f32.partialorder %v212, 0.0
    %vm331 = vcmp.ge.f32.partialorder %v217, 0.0
    %vm332 = vcmp.ge.f32.partialorder %v222, 0.0
    %vm333 = vcmp.ge.f32.partialorder %v227, 0.0
    %vm334 = vcmp.ge.f32.partialorder %v232, 0.0
    %vm335 = vcmp.ge.f32.partialorder %v237, 0.0
    %vm336 = vcmp.ge.f32.partialorder %v242, 0.0
    %vm337 = vcmp.ge.f32.partialorder %v247, 0.0
    %vm338 = vcmp.ge.f32.partialorder %v252, 0.0
    %vm339 = vcmp.ge.f32.partialorder %v257, 0.0
    %vm340 = vcmp.ge.f32.partialorder %v262, 0.0
    %vm341 = vcmp.ge.f32.partialorder %v267, 0.0
    %vm342 = vcmp.ge.f32.partialorder %v272, 0.0
    %vm343 = vcmp.ge.f32.partialorder %v277, 0.0
    %vm344 = vcmp.ge.f32.partialorder %v282, 0.0
    %vm345 = vcmp.ge.f32.partialorder %v287, 0.0
    %vm346 = vcmp.ge.f32.partialorder %v292, 0.0
    %vm347 = vcmp.ge.f32.partialorder %v297, 0.0
    %vm348 = vcmp.ge.f32.partialorder %v302, 0.0
    %vm349 = vcmp.ge.f32.partialorder %v307, 0.0
    %vm350 = vcmp.ge.f32.partialorder %v312, 0.0
    %vm351 = vcmp.ge.f32.partialorder %v317, 0.0
    %v352 = vmin.f32 %v162, 0.0
    %v353 = vmin.f32 %v167, 0.0
    %v354 = vmin.f32 %v172, 0.0
    %v355 = vmin.f32 %v177, 0.0
    %v356 = vmin.f32 %v182, 0.0
    %v357 = vmin.f32 %v187, 0.0
    %v358 = vmin.f32 %v192, 0.0
    %v359 = vmin.f32 %v197, 0.0
    %v360 = vmin.f32 %v202, 0.0
    %v361 = vmin.f32 %v207, 0.0
    %v362 = vmin.f32 %v212, 0.0
    %v363 = vmin.f32 %v217, 0.0
    %v364 = vmin.f32 %v222, 0.0
    %v365 = vmin.f32 %v227, 0.0
    %v366 = vmin.f32 %v232, 0.0
    %v367 = vmin.f32 %v237, 0.0
    %v368 = vmin.f32 %v242, 0.0
    %v369 = vmin.f32 %v247, 0.0
    %v370 = vmin.f32 %v252, 0.0
    %v371 = vmin.f32 %v257, 0.0
    %v372 = vmin.f32 %v262, 0.0
    %v373 = vmin.f32 %v267, 0.0
    %v374 = vmin.f32 %v272, 0.0
    %v375 = vmin.f32 %v277, 0.0
    %v376 = vmin.f32 %v282, 0.0
    %v377 = vmin.f32 %v287, 0.0
    %v378 = vmin.f32 %v292, 0.0
    %v379 = vmin.f32 %v297, 0.0
    %v380 = vmin.f32 %v302, 0.0
    %v381 = vmin.f32 %v307, 0.0
    %v382 = vmin.f32 %v312, 0.0
    %v383 = vmin.f32 %v317, 0.0
    %v384 = vmul.f32 %v352, 1.442695
    %v385 = vpow.pop %v384
    %v386 = vmul.f32 %v353, 1.442695
    %v387 = vpow.pop %v386
    %v388 = vmul.f32 %v354, 1.442695
    %v389 = vpow.pop %v388
    %v390 = vmul.f32 %v355, 1.442695
    %v391 = vpow.pop %v390
    %v392 = vmul.f32 %v356, 1.442695
    %v393 = vpow.pop %v392
    %v394 = vmul.f32 %v357, 1.442695
    %v395 = vpow.pop %v394
    %v396 = vmul.f32 %v358, 1.442695
    %v397 = vpow.pop %v396
    %v398 = vmul.f32 %v359, 1.442695
    %v399 = vpow.pop %v398
    %v400 = vmul.f32 %v360, 1.442695
    %v401 = vpow.pop %v400
    %v402 = vmul.f32 %v361, 1.442695
    %v403 = vpow.pop %v402
    %v404 = vmul.f32 %v362, 1.442695
    %v405 = vpow.pop %v404
    %v406 = vmul.f32 %v363, 1.442695
    %v407 = vpow.pop %v406
    %v408 = vmul.f32 %v364, 1.442695
    %v409 = vpow.pop %v408
    %v410 = vmul.f32 %v365, 1.442695
    %v411 = vpow.pop %v410
    %v412 = vmul.f32 %v366, 1.442695
    %v413 = vpow.pop %v412
    %v414 = vmul.f32 %v367, 1.442695
    %v415 = vpow.pop %v414
    %v416 = vmul.f32 %v368, 1.442695
    %v417 = vpow.pop %v416
    %v418 = vmul.f32 %v369, 1.442695
    %v419 = vpow.pop %v418
    %v420 = vmul.f32 %v370, 1.442695
    %v421 = vpow.pop %v420
    %v422 = vmul.f32 %v371, 1.442695
    %v423 = vpow.pop %v422
    %v424 = vmul.f32 %v372, 1.442695
    %v425 = vpow.pop %v424
    %v426 = vmul.f32 %v373, 1.442695
    %v427 = vpow.pop %v426
    %v428 = vmul.f32 %v374, 1.442695
    %v429 = vpow.pop %v428
    %v430 = vmul.f32 %v375, 1.442695
    %v431 = vpow.pop %v430
    %v432 = vmul.f32 %v376, 1.442695
    %v433 = vpow.pop %v432
    %v434 = vmul.f32 %v377, 1.442695
    %v435 = vpow.pop %v434
    %v436 = vmul.f32 %v378, 1.442695
    %v437 = vpow.pop %v436
    %v438 = vmul.f32 %v379, 1.442695
    %v439 = vpow.pop %v438
    %v440 = vmul.f32 %v380, 1.442695
    %v441 = vpow.pop %v440
    %v442 = vmul.f32 %v381, 1.442695
    %v443 = vpow.pop %v442
    %v444 = vmul.f32 %v382, 1.442695
    %v445 = vpow.pop %v444
    %v446 = vmul.f32 %v383, 1.442695
    %v447 = vpow.pop %v446
    %v448 = vsub.f32 %v385, 1.0
    %v449 = vsub.f32 %v387, 1.0
    %v450 = vsub.f32 %v389, 1.0
    %v451 = vsub.f32 %v391, 1.0
    %v452 = vsub.f32 %v393, 1.0
    %v453 = vsub.f32 %v395, 1.0
    %v454 = vsub.f32 %v397, 1.0
    %v455 = vsub.f32 %v399, 1.0
    %v456 = vsub.f32 %v401, 1.0
    %v457 = vsub.f32 %v403, 1.0
    %v458 = vsub.f32 %v405, 1.0
    %v459 = vsub.f32 %v407, 1.0
    %v460 = vsub.f32 %v409, 1.0
    %v461 = vsub.f32 %v411, 1.0
    %v462 = vsub.f32 %v413, 1.0
    %v463 = vsub.f32 %v415, 1.0
    %v464 = vsub.f32 %v417, 1.0
    %v465 = vsub.f32 %v419, 1.0
    %v466 = vsub.f32 %v421, 1.0
    %v467 = vsub.f32 %v423, 1.0
    %v468 = vsub.f32 %v425, 1.0
    %v469 = vsub.f32 %v427, 1.0
    %v470 = vsub.f32 %v429, 1.0
    %v471 = vsub.f32 %v431, 1.0
    %v472 = vsub.f32 %v433, 1.0
    %v473 = vsub.f32 %v435, 1.0
    %v474 = vsub.f32 %v437, 1.0
    %v475 = vsub.f32 %v439, 1.0
    %v476 = vsub.f32 %v441, 1.0
    %v477 = vsub.f32 %v443, 1.0
    %v478 = vsub.f32 %v445, 1.0
    %v479 = vsub.f32 %v447, 1.0
    %v480 = vmul.f32 %v448, 0.15
    %v481 = vmul.f32 %v449, 0.15
    %v482 = vmul.f32 %v450, 0.15
    %v483 = vmul.f32 %v451, 0.15
    %v484 = vmul.f32 %v452, 0.15
    %v485 = vmul.f32 %v453, 0.15
    %v486 = vmul.f32 %v454, 0.15
    %v487 = vmul.f32 %v455, 0.15
    %v488 = vmul.f32 %v456, 0.15
    %v489 = vmul.f32 %v457, 0.15
    %v490 = vmul.f32 %v458, 0.15
    %v491 = vmul.f32 %v459, 0.15
    %v492 = vmul.f32 %v460, 0.15
    %v493 = vmul.f32 %v461, 0.15
    %v494 = vmul.f32 %v462, 0.15
    %v495 = vmul.f32 %v463, 0.15
    %v496 = vmul.f32 %v464, 0.15
    %v497 = vmul.f32 %v465, 0.15
    %v498 = vmul.f32 %v466, 0.15
    %v499 = vmul.f32 %v467, 0.15
    %v500 = vmul.f32 %v468, 0.15
    %v501 = vmul.f32 %v469, 0.15
    %v502 = vmul.f32 %v470, 0.15
    %v503 = vmul.f32 %v471, 0.15
    %v504 = vmul.f32 %v472, 0.15
    %v505 = vmul.f32 %v473, 0.15
    %v506 = vmul.f32 %v474, 0.15
    %v507 = vmul.f32 %v475, 0.15
    %v508 = vmul.f32 %v476, 0.15
    %v509 = vmul.f32 %v477, 0.15
    %v510 = vmul.f32 %v478, 0.15
    %v511 = vmul.f32 %v479, 0.15
    %v512 = vsel %vm320, %v162, %v480
    %v513 = vsel %vm321, %v167, %v481
    %v514 = vsel %vm322, %v172, %v482
    %v515 = vsel %vm323, %v177, %v483
    %v516 = vsel %vm324, %v182, %v484
    %v517 = vsel %vm325, %v187, %v485
    %v518 = vsel %vm326, %v192, %v486
    %v519 = vsel %vm327, %v197, %v487
    %v520 = vsel %vm328, %v202, %v488
    %v521 = vsel %vm329, %v207, %v489
    %v522 = vsel %vm330, %v212, %v490
    %v523 = vsel %vm331, %v217, %v491
    %v524 = vsel %vm332, %v222, %v492
    %v525 = vsel %vm333, %v227, %v493
    %v526 = vsel %vm334, %v232, %v494
    %v527 = vsel %vm335, %v237, %v495
    %v528 = vsel %vm336, %v242, %v496
    %v529 = vsel %vm337, %v247, %v497
    %v530 = vsel %vm338, %v252, %v498
    %v531 = vsel %vm339, %v257, %v499
    %v532 = vsel %vm340, %v262, %v500
    %v533 = vsel %vm341, %v267, %v501
    %v534 = vsel %vm342, %v272, %v502
    %v535 = vsel %vm343, %v277, %v503
    %v536 = vsel %vm344, %v282, %v504
    %v537 = vsel %vm345, %v287, %v505
    %v538 = vsel %vm346, %v292, %v506
    %v539 = vsel %vm347, %v297, %v507
    %v540 = vsel %vm348, %v302, %v508
    %v541 = vsel %vm349, %v307, %v509
    %v542 = vsel %vm350, %v312, %v510
    %v543 = vsel %vm351, %v317, %v511
    %v544 = vld [vmem:[%s3] sm:$0xff]
    %v545 = vld [vmem:[%s3 + $0x8] sm:$0xff]
    %v546 = vld [vmem:[%s3 + $0x10] sm:$0xff]
    %v547 = vld [vmem:[%s3 + $0x18] sm:$0xff]
    %v548 = vld [vmem:[%s3 + $0x20] sm:$0xff]
    %v549 = vld [vmem:[%s3 + $0x28] sm:$0xff]
    %v550 = vld [vmem:[%s3 + $0x30] sm:$0xff]
    %v551 = vld [vmem:[%s3 + $0x38] sm:$0xff]
    %v552 = vld [vmem:[%s3 + $0x40] sm:$0xff]
    %v553 = vld [vmem:[%s3 + $0x48] sm:$0xff]
    %v554 = vld [vmem:[%s3 + $0x50] sm:$0xff]
    %v555 = vld [vmem:[%s3 + $0x58] sm:$0xff]
    %v556 = vld [vmem:[%s3 + $0x60] sm:$0xff]
    %v557 = vld [vmem:[%s3 + $0x68] sm:$0xff]
    %v558 = vld [vmem:[%s3 + $0x70] sm:$0xff]
    %v559 = vld [vmem:[%s3 + $0x78] sm:$0xff]
    %v560 = vld [vmem:[%s4] sm:$0x1]
    %v562 = vlaneseq
    %v563 = vshrl.u32 %v562, 7
    %v564 = vsub.s32 0, %v563
    %v565 = vrot.slane %v560, %v564
    %567 = vmatprep.subr.mxu0 0.0
    %568 = vmatpush1.msra.mxu0 %v544
    %569 = vmatprep.subr.mxu0 0.0
    %570 = vmatpush1.msra.mxu0 %v545
    %571 = vmatprep.subr.mxu0 0.0
    %572 = vmatpush1.msra.mxu0 %v546
    %573 = vmatprep.subr.mxu0 0.0
    %574 = vmatpush1.msra.mxu0 %v547
    %575 = vmatprep.subr.mxu0 0.0
    %576 = vmatpush1.msra.mxu0 %v548
    %577 = vmatprep.subr.mxu0 0.0
    %578 = vmatpush1.msra.mxu0 %v549
    %579 = vmatprep.subr.mxu0 0.0
    %580 = vmatpush1.msra.mxu0 %v550
    %581 = vmatprep.subr.mxu0 0.0
    %582 = vmatpush1.msra.mxu0 %v551
    %583 = vmatprep.subr.mxu0 0.0
    %584 = vmatpush1.msra.mxu0 %v552
    %585 = vmatprep.subr.mxu0 0.0
    %586 = vmatpush1.msra.mxu0 %v553
    %587 = vmatprep.subr.mxu0 0.0
    %588 = vmatpush1.msra.mxu0 %v554
    %589 = vmatprep.subr.mxu0 0.0
    %590 = vmatpush1.msra.mxu0 %v555
    %591 = vmatprep.subr.mxu0 0.0
    %592 = vmatpush1.msra.mxu0 %v556
    %593 = vmatprep.subr.mxu0 0.0
    %594 = vmatpush1.msra.mxu0 %v557
    %595 = vmatprep.subr.mxu0 0.0
    %596 = vmatpush1.msra.mxu0 %v558
    %597 = vmatprep.subr.mxu0 0.0
    %598 = vmatpush1.msra.mxu0 %v559
    %599 = vmatprep.subr.mxu0 0.0
    %600 = vmatpush1.msra.mxu0 0.0
    %601 = vmatprep.subr.mxu0 0.0
    %602 = vmatpush1.msra.mxu0 0.0
    %603 = vmatprep.subr.mxu0 0.0
    %604 = vmatpush1.msra.mxu0 0.0
    %605 = vmatprep.subr.mxu0 0.0
    %606 = vmatpush1.msra.mxu0 0.0
    %607 = vmatprep.subr.mxu0 0.0
    %608 = vmatpush1.msra.mxu0 0.0
    %609 = vmatprep.subr.mxu0 0.0
    %610 = vmatpush1.msra.mxu0 0.0
    %611 = vmatprep.subr.mxu0 0.0
    %612 = vmatpush1.msra.mxu0 0.0
    %613 = vmatprep.subr.mxu0 0.0
    %614 = vmatpush1.msra.mxu0 0.0
    %615 = vmatprep.subr.mxu0 0.0
    %616 = vmatpush1.msra.mxu0 0.0
    %617 = vmatprep.subr.mxu0 0.0
    %618 = vmatpush1.msra.mxu0 0.0
    %619 = vmatprep.subr.mxu0 0.0
    %620 = vmatpush1.msra.mxu0 0.0
    %621 = vmatprep.subr.mxu0 0.0
    %622 = vmatpush1.msra.mxu0 0.0
    %623 = vmatprep.subr.mxu0 0.0
    %624 = vmatpush1.msra.mxu0 0.0
    %625 = vmatprep.subr.mxu0 0.0
    %626 = vmatpush1.msra.mxu0 0.0
    %627 = vmatprep.subr.mxu0 0.0
    %628 = vmatpush1.msra.mxu0 0.0
    %629 = vmatprep.subr.mxu0 0.0
    %630 = vmatpush1.msra.mxu0 0.0
    %631 = vmatprep.mubr.f32.mxu0 0.0
    %632 = vmatmul.mubr.f32.gmra.mrb[0].mxu0 %v512
    %v633 = vpop.f32.mrb[0].mxu0
    %v634 = vadd.f32 %v565, %v633
    %v635 = vpop.f32.mrb[0].mxu0
    %636 = vmatprep.mubr.f32.mxu0 0.0
    %637 = vmatmul.mubr.f32.gmra.mrb[0].mxu0 %v513
    %v638 = vpop.f32.mrb[0].mxu0
    %v639 = vadd.f32 %v565, %v638
    %v640 = vpop.f32.mrb[0].mxu0
    %641 = vmatprep.mubr.f32.mxu0 0.0
    %642 = vmatmul.mubr.f32.gmra.mrb[0].mxu0 %v514
    %v643 = vpop.f32.mrb[0].mxu0
    %v644 = vadd.f32 %v565, %v643
    %v645 = vpop.f32.mrb[0].mxu0
    %646 = vmatprep.mubr.f32.mxu0 0.0
    %647 = vmatmul.mubr.f32.gmra.mrb[0].mxu0 %v515
    %v648 = vpop.f32.mrb[0].mxu0
    %v649 = vadd.f32 %v565, %v648
    %v650 = vpop.f32.mrb[0].mxu0
    %651 = vmatprep.mubr.f32.mxu0 0.0
    %652 = vmatmul.mubr.f32.gmra.mrb[0].mxu0 %v516
    %v653 = vpop.f32.mrb[0].mxu0
    %v654 = vadd.f32 %v565, %v653
    %v655 = vpop.f32.mrb[0].mxu0
    %656 = vmatprep.mubr.f32.mxu0 0.0
    %657 = vmatmul.mubr.f32.gmra.mrb[0].mxu0 %v517
    %v658 = vpop.f32.mrb[0].mxu0
    %v659 = vadd.f32 %v565, %v658
    %v660 = vpop.f32.mrb[0].mxu0
    %661 = vmatprep.mubr.f32.mxu0 0.0
    %662 = vmatmul.mubr.f32.gmra.mrb[0].mxu0 %v518
    %v663 = vpop.f32.mrb[0].mxu0
    %v664 = vadd.f32 %v565, %v663
    %v665 = vpop.f32.mrb[0].mxu0
    %666 = vmatprep.mubr.f32.mxu0 0.0
    %667 = vmatmul.mubr.f32.gmra.mrb[0].mxu0 %v519
    %v668 = vpop.f32.mrb[0].mxu0
    %v669 = vadd.f32 %v565, %v668
    %v670 = vpop.f32.mrb[0].mxu0
    %671 = vmatprep.mubr.f32.mxu0 0.0
    %672 = vmatmul.mubr.f32.gmra.mrb[0].mxu0 %v520
    %v673 = vpop.f32.mrb[0].mxu0
    %v674 = vadd.f32 %v565, %v673
    %v675 = vpop.f32.mrb[0].mxu0
    %676 = vmatprep.mubr.f32.mxu0 0.0
    %677 = vmatmul.mubr.f32.gmra.mrb[0].mxu0 %v521
    %v678 = vpop.f32.mrb[0].mxu0
    %v679 = vadd.f32 %v565, %v678
    %v680 = vpop.f32.mrb[0].mxu0
    %681 = vmatprep.mubr.f32.mxu0 0.0
    %682 = vmatmul.mubr.f32.gmra.mrb[0].mxu0 %v522
    %v683 = vpop.f32.mrb[0].mxu0
    %v684 = vadd.f32 %v565, %v683
    %v685 = vpop.f32.mrb[0].mxu0
    %686 = vmatprep.mubr.f32.mxu0 0.0
    %687 = vmatmul.mubr.f32.gmra.mrb[0].mxu0 %v523
    %v688 = vpop.f32.mrb[0].mxu0
    %v689 = vadd.f32 %v565, %v688
    %v690 = vpop.f32.mrb[0].mxu0
    %691 = vmatprep.mubr.f32.mxu0 0.0
    %692 = vmatmul.mubr.f32.gmra.mrb[0].mxu0 %v524
    %v693 = vpop.f32.mrb[0].mxu0
    %v694 = vadd.f32 %v565, %v693
    %v695 = vpop.f32.mrb[0].mxu0
    %696 = vmatprep.mubr.f32.mxu0 0.0
    %697 = vmatmul.mubr.f32.gmra.mrb[0].mxu0 %v525
    %v698 = vpop.f32.mrb[0].mxu0
    %v699 = vadd.f32 %v565, %v698
    %v700 = vpop.f32.mrb[0].mxu0
    %701 = vmatprep.mubr.f32.mxu0 0.0
    %702 = vmatmul.mubr.f32.gmra.mrb[0].mxu0 %v526
    %v703 = vpop.f32.mrb[0].mxu0
    %v704 = vadd.f32 %v565, %v703
    %v705 = vpop.f32.mrb[0].mxu0
    %706 = vmatprep.mubr.f32.mxu0 0.0
    %707 = vmatmul.mubr.f32.gmra.mrb[0].mxu0 %v527
    %v708 = vpop.f32.mrb[0].mxu0
    %v709 = vadd.f32 %v565, %v708
    %v710 = vpop.f32.mrb[0].mxu0
    %711 = vmatprep.mubr.f32.mxu0 0.0
    %712 = vmatmul.mubr.f32.gmra.mrb[0].mxu0 %v528
    %v713 = vpop.f32.mrb[0].mxu0
    %v714 = vadd.f32 %v565, %v713
    %v715 = vpop.f32.mrb[0].mxu0
    %716 = vmatprep.mubr.f32.mxu0 0.0
    %717 = vmatmul.mubr.f32.gmra.mrb[0].mxu0 %v529
    %v718 = vpop.f32.mrb[0].mxu0
    %v719 = vadd.f32 %v565, %v718
    %v720 = vpop.f32.mrb[0].mxu0
    %721 = vmatprep.mubr.f32.mxu0 0.0
    %722 = vmatmul.mubr.f32.gmra.mrb[0].mxu0 %v530
    %v723 = vpop.f32.mrb[0].mxu0
    %v724 = vadd.f32 %v565, %v723
    %v725 = vpop.f32.mrb[0].mxu0
    %726 = vmatprep.mubr.f32.mxu0 0.0
    %727 = vmatmul.mubr.f32.gmra.mrb[0].mxu0 %v531
    %v728 = vpop.f32.mrb[0].mxu0
    %v729 = vadd.f32 %v565, %v728
    %v730 = vpop.f32.mrb[0].mxu0
    %731 = vmatprep.mubr.f32.mxu0 0.0
    %732 = vmatmul.mubr.f32.gmra.mrb[0].mxu0 %v532
    %v733 = vpop.f32.mrb[0].mxu0
    %v734 = vadd.f32 %v565, %v733
    %v735 = vpop.f32.mrb[0].mxu0
    %736 = vmatprep.mubr.f32.mxu0 0.0
    %737 = vmatmul.mubr.f32.gmra.mrb[0].mxu0 %v533
    %v738 = vpop.f32.mrb[0].mxu0
    %v739 = vadd.f32 %v565, %v738
    %v740 = vpop.f32.mrb[0].mxu0
    %741 = vmatprep.mubr.f32.mxu0 0.0
    %742 = vmatmul.mubr.f32.gmra.mrb[0].mxu0 %v534
    %v743 = vpop.f32.mrb[0].mxu0
    %v744 = vadd.f32 %v565, %v743
    %v745 = vpop.f32.mrb[0].mxu0
    %746 = vmatprep.mubr.f32.mxu0 0.0
    %747 = vmatmul.mubr.f32.gmra.mrb[0].mxu0 %v535
    %v748 = vpop.f32.mrb[0].mxu0
    %v749 = vadd.f32 %v565, %v748
    %v750 = vpop.f32.mrb[0].mxu0
    %751 = vmatprep.mubr.f32.mxu0 0.0
    %752 = vmatmul.mubr.f32.gmra.mrb[0].mxu0 %v536
    %v753 = vpop.f32.mrb[0].mxu0
    %v754 = vadd.f32 %v565, %v753
    %v755 = vpop.f32.mrb[0].mxu0
    %756 = vmatprep.mubr.f32.mxu0 0.0
    %757 = vmatmul.mubr.f32.gmra.mrb[0].mxu0 %v537
    %v758 = vpop.f32.mrb[0].mxu0
    %v759 = vadd.f32 %v565, %v758
    %v760 = vpop.f32.mrb[0].mxu0
    %761 = vmatprep.mubr.f32.mxu0 0.0
    %762 = vmatmul.mubr.f32.gmra.mrb[0].mxu0 %v538
    %v763 = vpop.f32.mrb[0].mxu0
    %v764 = vadd.f32 %v565, %v763
    %v765 = vpop.f32.mrb[0].mxu0
    %766 = vmatprep.mubr.f32.mxu0 0.0
    %767 = vmatmul.mubr.f32.gmra.mrb[0].mxu0 %v539
    %v768 = vpop.f32.mrb[0].mxu0
    %v769 = vadd.f32 %v565, %v768
    %v770 = vpop.f32.mrb[0].mxu0
    %771 = vmatprep.mubr.f32.mxu0 0.0
    %772 = vmatmul.mubr.f32.gmra.mrb[0].mxu0 %v540
    %v773 = vpop.f32.mrb[0].mxu0
    %v774 = vadd.f32 %v565, %v773
    %v775 = vpop.f32.mrb[0].mxu0
    %776 = vmatprep.mubr.f32.mxu0 0.0
    %777 = vmatmul.mubr.f32.gmra.mrb[0].mxu0 %v541
    %v778 = vpop.f32.mrb[0].mxu0
    %v779 = vadd.f32 %v565, %v778
    %v780 = vpop.f32.mrb[0].mxu0
    %781 = vmatprep.mubr.f32.mxu0 0.0
    %782 = vmatmul.mubr.f32.gmra.mrb[0].mxu0 %v542
    %v783 = vpop.f32.mrb[0].mxu0
    %v784 = vadd.f32 %v565, %v783
    %v785 = vpop.f32.mrb[0].mxu0
    %786 = vmatprep.mubr.f32.mxu0 0.0
    %787 = vmatmul.mubr.f32.gmra.mrb[0].mxu0 %v543
    %v788 = vpop.f32.mrb[0].mxu0
    %v789 = vadd.f32 %v565, %v788
    %v790 = vpop.f32.mrb[0].mxu0
    %791 = vdwg.mxu0
    %vm792 = vcmp.ge.f32.partialorder %v634, 0.0
    %vm793 = vcmp.ge.f32.partialorder %v639, 0.0
    %vm794 = vcmp.ge.f32.partialorder %v644, 0.0
    %vm795 = vcmp.ge.f32.partialorder %v649, 0.0
    %vm796 = vcmp.ge.f32.partialorder %v654, 0.0
    %vm797 = vcmp.ge.f32.partialorder %v659, 0.0
    %vm798 = vcmp.ge.f32.partialorder %v664, 0.0
    %vm799 = vcmp.ge.f32.partialorder %v669, 0.0
    %vm800 = vcmp.ge.f32.partialorder %v674, 0.0
    %vm801 = vcmp.ge.f32.partialorder %v679, 0.0
    %vm802 = vcmp.ge.f32.partialorder %v684, 0.0
    %vm803 = vcmp.ge.f32.partialorder %v689, 0.0
    %vm804 = vcmp.ge.f32.partialorder %v694, 0.0
    %vm805 = vcmp.ge.f32.partialorder %v699, 0.0
    %vm806 = vcmp.ge.f32.partialorder %v704, 0.0
    %vm807 = vcmp.ge.f32.partialorder %v709, 0.0
    %vm808 = vcmp.ge.f32.partialorder %v714, 0.0
    %vm809 = vcmp.ge.f32.partialorder %v719, 0.0
    %vm810 = vcmp.ge.f32.partialorder %v724, 0.0
    %vm811 = vcmp.ge.f32.partialorder %v729, 0.0
    %vm812 = vcmp.ge.f32.partialorder %v734, 0.0
    %vm813 = vcmp.ge.f32.partialorder %v739, 0.0
    %vm814 = vcmp.ge.f32.partialorder %v744, 0.0
    %vm815 = vcmp.ge.f32.partialorder %v749, 0.0
    %vm816 = vcmp.ge.f32.partialorder %v754, 0.0
    %vm817 = vcmp.ge.f32.partialorder %v759, 0.0
    %vm818 = vcmp.ge.f32.partialorder %v764, 0.0
    %vm819 = vcmp.ge.f32.partialorder %v769, 0.0
    %vm820 = vcmp.ge.f32.partialorder %v774, 0.0
    %vm821 = vcmp.ge.f32.partialorder %v779, 0.0
    %vm822 = vcmp.ge.f32.partialorder %v784, 0.0
    %vm823 = vcmp.ge.f32.partialorder %v789, 0.0
    %v824 = vmin.f32 %v634, 0.0
    %v825 = vmin.f32 %v639, 0.0
    %v826 = vmin.f32 %v644, 0.0
    %v827 = vmin.f32 %v649, 0.0
    %v828 = vmin.f32 %v654, 0.0
    %v829 = vmin.f32 %v659, 0.0
    %v830 = vmin.f32 %v664, 0.0
    %v831 = vmin.f32 %v669, 0.0
    %v832 = vmin.f32 %v674, 0.0
    %v833 = vmin.f32 %v679, 0.0
    %v834 = vmin.f32 %v684, 0.0
    %v835 = vmin.f32 %v689, 0.0
    %v836 = vmin.f32 %v694, 0.0
    %v837 = vmin.f32 %v699, 0.0
    %v838 = vmin.f32 %v704, 0.0
    %v839 = vmin.f32 %v709, 0.0
    %v840 = vmin.f32 %v714, 0.0
    %v841 = vmin.f32 %v719, 0.0
    %v842 = vmin.f32 %v724, 0.0
    %v843 = vmin.f32 %v729, 0.0
    %v844 = vmin.f32 %v734, 0.0
    %v845 = vmin.f32 %v739, 0.0
    %v846 = vmin.f32 %v744, 0.0
    %v847 = vmin.f32 %v749, 0.0
    %v848 = vmin.f32 %v754, 0.0
    %v849 = vmin.f32 %v759, 0.0
    %v850 = vmin.f32 %v764, 0.0
    %v851 = vmin.f32 %v769, 0.0
    %v852 = vmin.f32 %v774, 0.0
    %v853 = vmin.f32 %v779, 0.0
    %v854 = vmin.f32 %v784, 0.0
    %v855 = vmin.f32 %v789, 0.0
    %v856 = vmul.f32 %v824, 1.442695
    %v857 = vpow.pop %v856
    %v858 = vmul.f32 %v825, 1.442695
    %v859 = vpow.pop %v858
    %v860 = vmul.f32 %v826, 1.442695
    %v861 = vpow.pop %v860
    %v862 = vmul.f32 %v827, 1.442695
    %v863 = vpow.pop %v862
    %v864 = vmul.f32 %v828, 1.442695
    %v865 = vpow.pop %v864
    %v866 = vmul.f32 %v829, 1.442695
    %v867 = vpow.pop %v866
    %v868 = vmul.f32 %v830, 1.442695
    %v869 = vpow.pop %v868
    %v870 = vmul.f32 %v831, 1.442695
    %v871 = vpow.pop %v870
    %v872 = vmul.f32 %v832, 1.442695
    %v873 = vpow.pop %v872
    %v874 = vmul.f32 %v833, 1.442695
    %v875 = vpow.pop %v874
    %v876 = vmul.f32 %v834, 1.442695
    %v877 = vpow.pop %v876
    %v878 = vmul.f32 %v835, 1.442695
    %v879 = vpow.pop %v878
    %v880 = vmul.f32 %v836, 1.442695
    %v881 = vpow.pop %v880
    %v882 = vmul.f32 %v837, 1.442695
    %v883 = vpow.pop %v882
    %v884 = vmul.f32 %v838, 1.442695
    %v885 = vpow.pop %v884
    %v886 = vmul.f32 %v839, 1.442695
    %v887 = vpow.pop %v886
    %v888 = vmul.f32 %v840, 1.442695
    %v889 = vpow.pop %v888
    %v890 = vmul.f32 %v841, 1.442695
    %v891 = vpow.pop %v890
    %v892 = vmul.f32 %v842, 1.442695
    %v893 = vpow.pop %v892
    %v894 = vmul.f32 %v843, 1.442695
    %v895 = vpow.pop %v894
    %v896 = vmul.f32 %v844, 1.442695
    %v897 = vpow.pop %v896
    %v898 = vmul.f32 %v845, 1.442695
    %v899 = vpow.pop %v898
    %v900 = vmul.f32 %v846, 1.442695
    %v901 = vpow.pop %v900
    %v902 = vmul.f32 %v847, 1.442695
    %v903 = vpow.pop %v902
    %v904 = vmul.f32 %v848, 1.442695
    %v905 = vpow.pop %v904
    %v906 = vmul.f32 %v849, 1.442695
    %v907 = vpow.pop %v906
    %v908 = vmul.f32 %v850, 1.442695
    %v909 = vpow.pop %v908
    %v910 = vmul.f32 %v851, 1.442695
    %v911 = vpow.pop %v910
    %v912 = vmul.f32 %v852, 1.442695
    %v913 = vpow.pop %v912
    %v914 = vmul.f32 %v853, 1.442695
    %v915 = vpow.pop %v914
    %v916 = vmul.f32 %v854, 1.442695
    %v917 = vpow.pop %v916
    %v918 = vmul.f32 %v855, 1.442695
    %v919 = vpow.pop %v918
    %v920 = vsub.f32 %v857, 1.0
    %v921 = vsub.f32 %v859, 1.0
    %v922 = vsub.f32 %v861, 1.0
    %v923 = vsub.f32 %v863, 1.0
    %v924 = vsub.f32 %v865, 1.0
    %v925 = vsub.f32 %v867, 1.0
    %v926 = vsub.f32 %v869, 1.0
    %v927 = vsub.f32 %v871, 1.0
    %v928 = vsub.f32 %v873, 1.0
    %v929 = vsub.f32 %v875, 1.0
    %v930 = vsub.f32 %v877, 1.0
    %v931 = vsub.f32 %v879, 1.0
    %v932 = vsub.f32 %v881, 1.0
    %v933 = vsub.f32 %v883, 1.0
    %v934 = vsub.f32 %v885, 1.0
    %v935 = vsub.f32 %v887, 1.0
    %v936 = vsub.f32 %v889, 1.0
    %v937 = vsub.f32 %v891, 1.0
    %v938 = vsub.f32 %v893, 1.0
    %v939 = vsub.f32 %v895, 1.0
    %v940 = vsub.f32 %v897, 1.0
    %v941 = vsub.f32 %v899, 1.0
    %v942 = vsub.f32 %v901, 1.0
    %v943 = vsub.f32 %v903, 1.0
    %v944 = vsub.f32 %v905, 1.0
    %v945 = vsub.f32 %v907, 1.0
    %v946 = vsub.f32 %v909, 1.0
    %v947 = vsub.f32 %v911, 1.0
    %v948 = vsub.f32 %v913, 1.0
    %v949 = vsub.f32 %v915, 1.0
    %v950 = vsub.f32 %v917, 1.0
    %v951 = vsub.f32 %v919, 1.0
    %v952 = vmul.f32 %v920, 0.1
    %v953 = vmul.f32 %v921, 0.1
    %v954 = vmul.f32 %v922, 0.1
    %v955 = vmul.f32 %v923, 0.1
    %v956 = vmul.f32 %v924, 0.1
    %v957 = vmul.f32 %v925, 0.1
    %v958 = vmul.f32 %v926, 0.1
    %v959 = vmul.f32 %v927, 0.1
    %v960 = vmul.f32 %v928, 0.1
    %v961 = vmul.f32 %v929, 0.1
    %v962 = vmul.f32 %v930, 0.1
    %v963 = vmul.f32 %v931, 0.1
    %v964 = vmul.f32 %v932, 0.1
    %v965 = vmul.f32 %v933, 0.1
    %v966 = vmul.f32 %v934, 0.1
    %v967 = vmul.f32 %v935, 0.1
    %v968 = vmul.f32 %v936, 0.1
    %v969 = vmul.f32 %v937, 0.1
    %v970 = vmul.f32 %v938, 0.1
    %v971 = vmul.f32 %v939, 0.1
    %v972 = vmul.f32 %v940, 0.1
    %v973 = vmul.f32 %v941, 0.1
    %v974 = vmul.f32 %v942, 0.1
    %v975 = vmul.f32 %v943, 0.1
    %v976 = vmul.f32 %v944, 0.1
    %v977 = vmul.f32 %v945, 0.1
    %v978 = vmul.f32 %v946, 0.1
    %v979 = vmul.f32 %v947, 0.1
    %v980 = vmul.f32 %v948, 0.1
    %v981 = vmul.f32 %v949, 0.1
    %v982 = vmul.f32 %v950, 0.1
    %v983 = vmul.f32 %v951, 0.1
    %v984 = vsel %vm792, %v634, %v952
    %v985 = vsel %vm793, %v639, %v953
    %v986 = vsel %vm794, %v644, %v954
    %v987 = vsel %vm795, %v649, %v955
    %v988 = vsel %vm796, %v654, %v956
    %v989 = vsel %vm797, %v659, %v957
    %v990 = vsel %vm798, %v664, %v958
    %v991 = vsel %vm799, %v669, %v959
    %v992 = vsel %vm800, %v674, %v960
    %v993 = vsel %vm801, %v679, %v961
    %v994 = vsel %vm802, %v684, %v962
    %v995 = vsel %vm803, %v689, %v963
    %v996 = vsel %vm804, %v694, %v964
    %v997 = vsel %vm805, %v699, %v965
    %v998 = vsel %vm806, %v704, %v966
    %v999 = vsel %vm807, %v709, %v967
    %v1000 = vsel %vm808, %v714, %v968
    %v1001 = vsel %vm809, %v719, %v969
    %v1002 = vsel %vm810, %v724, %v970
    %v1003 = vsel %vm811, %v729, %v971
    %v1004 = vsel %vm812, %v734, %v972
    %v1005 = vsel %vm813, %v739, %v973
    %v1006 = vsel %vm814, %v744, %v974
    %v1007 = vsel %vm815, %v749, %v975
    %v1008 = vsel %vm816, %v754, %v976
    %v1009 = vsel %vm817, %v759, %v977
    %v1010 = vsel %vm818, %v764, %v978
    %v1011 = vsel %vm819, %v769, %v979
    %v1012 = vsel %vm820, %v774, %v980
    %v1013 = vsel %vm821, %v779, %v981
    %v1014 = vsel %vm822, %v784, %v982
    %v1015 = vsel %vm823, %v789, %v983
    %v1016 = vld [vmem:[#allocation2] sm:$0xff]
    %v1017 = vld [vmem:[#allocation2 + $0x8] sm:$0xff]
    %v1018 = vld [vmem:[#allocation2 + $0x10] sm:$0xff]
    %v1019 = vld [vmem:[#allocation2 + $0x18] sm:$0xff]
    %v1020 = vld [vmem:[#allocation2 + $0x20] sm:$0xff]
    %v1021 = vld [vmem:[#allocation2 + $0x28] sm:$0xff]
    %v1022 = vld [vmem:[#allocation2 + $0x30] sm:$0xff]
    %v1023 = vld [vmem:[#allocation2 + $0x38] sm:$0xff]
    %v1024 = vld [vmem:[#allocation2 + $0x40] sm:$0xff]
    %v1025 = vld [vmem:[#allocation2 + $0x48] sm:$0xff]
    %v1026 = vld [vmem:[#allocation2 + $0x50] sm:$0xff]
    %v1027 = vld [vmem:[#allocation2 + $0x58] sm:$0xff]
    %v1028 = vld [vmem:[#allocation2 + $0x60] sm:$0xff]
    %v1029 = vld [vmem:[#allocation2 + $0x68] sm:$0xff]
    %v1030 = vld [vmem:[#allocation2 + $0x70] sm:$0xff]
    %v1031 = vld [vmem:[#allocation2 + $0x78] sm:$0xff]
    %v1032 = vld [vmem:[%s6] sm:$0x1]
    %v1034 = vlaneseq
    %v1035 = vshrl.u32 %v1034, 7
    %v1036 = vsub.s32 0, %v1035
    %v1037 = vrot.slane %v1032, %v1036
    %1039 = vmatprep.subr.mxu0 0.0
    %1040 = vmatpush1.msra.mxu0 %v1016
    %1041 = vmatprep.subr.mxu0 0.0
    %1042 = vmatpush1.msra.mxu0 %v1017
    %1043 = vmatprep.subr.mxu0 0.0
    %1044 = vmatpush1.msra.mxu0 %v1018
    %1045 = vmatprep.subr.mxu0 0.0
    %1046 = vmatpush1.msra.mxu0 %v1019
    %1047 = vmatprep.subr.mxu0 0.0
    %1048 = vmatpush1.msra.mxu0 %v1020
    %1049 = vmatprep.subr.mxu0 0.0
    %1050 = vmatpush1.msra.mxu0 %v1021
    %1051 = vmatprep.subr.mxu0 0.0
    %1052 = vmatpush1.msra.mxu0 %v1022
    %1053 = vmatprep.subr.mxu0 0.0
    %1054 = vmatpush1.msra.mxu0 %v1023
    %1055 = vmatprep.subr.mxu0 0.0
    %1056 = vmatpush1.msra.mxu0 %v1024
    %1057 = vmatprep.subr.mxu0 0.0
    %1058 = vmatpush1.msra.mxu0 %v1025
    %1059 = vmatprep.subr.mxu0 0.0
    %1060 = vmatpush1.msra.mxu0 %v1026
    %1061 = vmatprep.subr.mxu0 0.0
    %1062 = vmatpush1.msra.mxu0 %v1027
    %1063 = vmatprep.subr.mxu0 0.0
    %1064 = vmatpush1.msra.mxu0 %v1028
    %1065 = vmatprep.subr.mxu0 0.0
    %1066 = vmatpush1.msra.mxu0 %v1029
    %1067 = vmatprep.subr.mxu0 0.0
    %1068 = vmatpush1.msra.mxu0 %v1030
    %1069 = vmatprep.subr.mxu0 0.0
    %1070 = vmatpush1.msra.mxu0 %v1031
    %1071 = vmatprep.subr.mxu0 0.0
    %1072 = vmatpush1.msra.mxu0 0.0
    %1073 = vmatprep.subr.mxu0 0.0
    %1074 = vmatpush1.msra.mxu0 0.0
    %1075 = vmatprep.subr.mxu0 0.0
    %1076 = vmatpush1.msra.mxu0 0.0
    %1077 = vmatprep.subr.mxu0 0.0
    %1078 = vmatpush1.msra.mxu0 0.0
    %1079 = vmatprep.subr.mxu0 0.0
    %1080 = vmatpush1.msra.mxu0 0.0
    %1081 = vmatprep.subr.mxu0 0.0
    %1082 = vmatpush1.msra.mxu0 0.0
    %1083 = vmatprep.subr.mxu0 0.0
    %1084 = vmatpush1.msra.mxu0 0.0
    %1085 = vmatprep.subr.mxu0 0.0
    %1086 = vmatpush1.msra.mxu0 0.0
    %1087 = vmatprep.subr.mxu0 0.0
    %1088 = vmatpush1.msra.mxu0 0.0
    %1089 = vmatprep.subr.mxu0 0.0
    %1090 = vmatpush1.msra.mxu0 0.0
    %1091 = vmatprep.subr.mxu0 0.0
    %1092 = vmatpush1.msra.mxu0 0.0
    %1093 = vmatprep.subr.mxu0 0.0
    %1094 = vmatpush1.msra.mxu0 0.0
    %1095 = vmatprep.subr.mxu0 0.0
    %1096 = vmatpush1.msra.mxu0 0.0
    %1097 = vmatprep.subr.mxu0 0.0
    %1098 = vmatpush1.msra.mxu0 0.0
    %1099 = vmatprep.subr.mxu0 0.0
    %1100 = vmatpush1.msra.mxu0 0.0
    %1101 = vmatprep.subr.mxu0 0.0
    %1102 = vmatpush1.msra.mxu0 0.0
    %1103 = vmatprep.mubr.f32.mxu0 0.0
    %1104 = vmatmul.mubr.f32.gmra.mrb[0].mxu0 %v984
    %v1105 = vpop.f32.mrb[0].mxu0
    %v1106 = vadd.f32 %v1037, %v1105
    %v1107 = vpop.f32.mrb[0].mxu0
    %1108 = vmatprep.mubr.f32.mxu0 0.0
    %1109 = vmatmul.mubr.f32.gmra.mrb[0].mxu0 %v985
    %v1110 = vpop.f32.mrb[0].mxu0
    %v1111 = vadd.f32 %v1037, %v1110
    %v1112 = vpop.f32.mrb[0].mxu0
    %1113 = vmatprep.mubr.f32.mxu0 0.0
    %1114 = vmatmul.mubr.f32.gmra.mrb[0].mxu0 %v986
    %v1115 = vpop.f32.mrb[0].mxu0
    %v1116 = vadd.f32 %v1037, %v1115
    %v1117 = vpop.f32.mrb[0].mxu0
    %1118 = vmatprep.mubr.f32.mxu0 0.0
    %1119 = vmatmul.mubr.f32.gmra.mrb[0].mxu0 %v987
    %v1120 = vpop.f32.mrb[0].mxu0
    %v1121 = vadd.f32 %v1037, %v1120
    %v1122 = vpop.f32.mrb[0].mxu0
    %1123 = vmatprep.mubr.f32.mxu0 0.0
    %1124 = vmatmul.mubr.f32.gmra.mrb[0].mxu0 %v988
    %v1125 = vpop.f32.mrb[0].mxu0
    %v1126 = vadd.f32 %v1037, %v1125
    %v1127 = vpop.f32.mrb[0].mxu0
    %1128 = vmatprep.mubr.f32.mxu0 0.0
    %1129 = vmatmul.mubr.f32.gmra.mrb[0].mxu0 %v989
    %v1130 = vpop.f32.mrb[0].mxu0
    %v1131 = vadd.f32 %v1037, %v1130
    %v1132 = vpop.f32.mrb[0].mxu0
    %1133 = vmatprep.mubr.f32.mxu0 0.0
    %1134 = vmatmul.mubr.f32.gmra.mrb[0].mxu0 %v990
    %v1135 = vpop.f32.mrb[0].mxu0
    %v1136 = vadd.f32 %v1037, %v1135
    %v1137 = vpop.f32.mrb[0].mxu0
    %1138 = vmatprep.mubr.f32.mxu0 0.0
    %1139 = vmatmul.mubr.f32.gmra.mrb[0].mxu0 %v991
    %v1140 = vpop.f32.mrb[0].mxu0
    %v1141 = vadd.f32 %v1037, %v1140
    %v1142 = vpop.f32.mrb[0].mxu0
    %1143 = vmatprep.mubr.f32.mxu0 0.0
    %1144 = vmatmul.mubr.f32.gmra.mrb[0].mxu0 %v992
    %v1145 = vpop.f32.mrb[0].mxu0
    %v1146 = vadd.f32 %v1037, %v1145
    %v1147 = vpop.f32.mrb[0].mxu0
    %1148 = vmatprep.mubr.f32.mxu0 0.0
    %1149 = vmatmul.mubr.f32.gmra.mrb[0].mxu0 %v993
    %v1150 = vpop.f32.mrb[0].mxu0
    %v1151 = vadd.f32 %v1037, %v1150
    %v1152 = vpop.f32.mrb[0].mxu0
    %1153 = vmatprep.mubr.f32.mxu0 0.0
    %1154 = vmatmul.mubr.f32.gmra.mrb[0].mxu0 %v994
    %v1155 = vpop.f32.mrb[0].mxu0
    %v1156 = vadd.f32 %v1037, %v1155
    %v1157 = vpop.f32.mrb[0].mxu0
    %1158 = vmatprep.mubr.f32.mxu0 0.0
    %1159 = vmatmul.mubr.f32.gmra.mrb[0].mxu0 %v995
    %v1160 = vpop.f32.mrb[0].mxu0
    %v1161 = vadd.f32 %v1037, %v1160
    %v1162 = vpop.f32.mrb[0].mxu0
    %1163 = vmatprep.mubr.f32.mxu0 0.0
    %1164 = vmatmul.mubr.f32.gmra.mrb[0].mxu0 %v996
    %v1165 = vpop.f32.mrb[0].mxu0
    %v1166 = vadd.f32 %v1037, %v1165
    %v1167 = vpop.f32.mrb[0].mxu0
    %1168 = vmatprep.mubr.f32.mxu0 0.0
    %1169 = vmatmul.mubr.f32.gmra.mrb[0].mxu0 %v997
    %v1170 = vpop.f32.mrb[0].mxu0
    %v1171 = vadd.f32 %v1037, %v1170
    %v1172 = vpop.f32.mrb[0].mxu0
    %1173 = vmatprep.mubr.f32.mxu0 0.0
    %1174 = vmatmul.mubr.f32.gmra.mrb[0].mxu0 %v998
    %v1175 = vpop.f32.mrb[0].mxu0
    %v1176 = vadd.f32 %v1037, %v1175
    %v1177 = vpop.f32.mrb[0].mxu0
    %1178 = vmatprep.mubr.f32.mxu0 0.0
    %1179 = vmatmul.mubr.f32.gmra.mrb[0].mxu0 %v999
    %v1180 = vpop.f32.mrb[0].mxu0
    %v1181 = vadd.f32 %v1037, %v1180
    %v1182 = vpop.f32.mrb[0].mxu0
    %1183 = vmatprep.mubr.f32.mxu0 0.0
    %1184 = vmatmul.mubr.f32.gmra.mrb[0].mxu0 %v1000
    %v1185 = vpop.f32.mrb[0].mxu0
    %v1186 = vadd.f32 %v1037, %v1185
    %v1187 = vpop.f32.mrb[0].mxu0
    %1188 = vmatprep.mubr.f32.mxu0 0.0
    %1189 = vmatmul.mubr.f32.gmra.mrb[0].mxu0 %v1001
    %v1190 = vpop.f32.mrb[0].mxu0
    %v1191 = vadd.f32 %v1037, %v1190
    %v1192 = vpop.f32.mrb[0].mxu0
    %1193 = vmatprep.mubr.f32.mxu0 0.0
    %1194 = vmatmul.mubr.f32.gmra.mrb[0].mxu0 %v1002
    %v1195 = vpop.f32.mrb[0].mxu0
    %v1196 = vadd.f32 %v1037, %v1195
    %v1197 = vpop.f32.mrb[0].mxu0
    %1198 = vmatprep.mubr.f32.mxu0 0.0
    %1199 = vmatmul.mubr.f32.gmra.mrb[0].mxu0 %v1003
    %v1200 = vpop.f32.mrb[0].mxu0
    %v1201 = vadd.f32 %v1037, %v1200
    %v1202 = vpop.f32.mrb[0].mxu0
    %1203 = vmatprep.mubr.f32.mxu0 0.0
    %1204 = vmatmul.mubr.f32.gmra.mrb[0].mxu0 %v1004
    %v1205 = vpop.f32.mrb[0].mxu0
    %v1206 = vadd.f32 %v1037, %v1205
    %v1207 = vpop.f32.mrb[0].mxu0
    %1208 = vmatprep.mubr.f32.mxu0 0.0
    %1209 = vmatmul.mubr.f32.gmra.mrb[0].mxu0 %v1005
    %v1210 = vpop.f32.mrb[0].mxu0
    %v1211 = vadd.f32 %v1037, %v1210
    %v1212 = vpop.f32.mrb[0].mxu0
    %1213 = vmatprep.mubr.f32.mxu0 0.0
    %1214 = vmatmul.mubr.f32.gmra.mrb[0].mxu0 %v1006
    %v1215 = vpop.f32.mrb[0].mxu0
    %v1216 = vadd.f32 %v1037, %v1215
    %v1217 = vpop.f32.mrb[0].mxu0
    %1218 = vmatprep.mubr.f32.mxu0 0.0
    %1219 = vmatmul.mubr.f32.gmra.mrb[0].mxu0 %v1007
    %v1220 = vpop.f32.mrb[0].mxu0
    %v1221 = vadd.f32 %v1037, %v1220
    %v1222 = vpop.f32.mrb[0].mxu0
    %1223 = vmatprep.mubr.f32.mxu0 0.0
    %1224 = vmatmul.mubr.f32.gmra.mrb[0].mxu0 %v1008
    %v1225 = vpop.f32.mrb[0].mxu0
    %v1226 = vadd.f32 %v1037, %v1225
    %v1227 = vpop.f32.mrb[0].mxu0
    %1228 = vmatprep.mubr.f32.mxu0 0.0
    %1229 = vmatmul.mubr.f32.gmra.mrb[0].mxu0 %v1009
    %v1230 = vpop.f32.mrb[0].mxu0
    %v1231 = vadd.f32 %v1037, %v1230
    %v1232 = vpop.f32.mrb[0].mxu0
    %1233 = vmatprep.mubr.f32.mxu0 0.0
    %1234 = vmatmul.mubr.f32.gmra.mrb[0].mxu0 %v1010
    %v1235 = vpop.f32.mrb[0].mxu0
    %v1236 = vadd.f32 %v1037, %v1235
    %v1237 = vpop.f32.mrb[0].mxu0
    %1238 = vmatprep.mubr.f32.mxu0 0.0
    %1239 = vmatmul.mubr.f32.gmra.mrb[0].mxu0 %v1011
    %v1240 = vpop.f32.mrb[0].mxu0
    %v1241 = vadd.f32 %v1037, %v1240
    %v1242 = vpop.f32.mrb[0].mxu0
    %1243 = vmatprep.mubr.f32.mxu0 0.0
    %1244 = vmatmul.mubr.f32.gmra.mrb[0].mxu0 %v1012
    %v1245 = vpop.f32.mrb[0].mxu0
    %v1246 = vadd.f32 %v1037, %v1245
    %v1247 = vpop.f32.mrb[0].mxu0
    %1248 = vmatprep.mubr.f32.mxu0 0.0
    %1249 = vmatmul.mubr.f32.gmra.mrb[0].mxu0 %v1013
    %v1250 = vpop.f32.mrb[0].mxu0
    %v1251 = vadd.f32 %v1037, %v1250
    %v1252 = vpop.f32.mrb[0].mxu0
    %1253 = vmatprep.mubr.f32.mxu0 0.0
    %1254 = vmatmul.mubr.f32.gmra.mrb[0].mxu0 %v1014
    %v1255 = vpop.f32.mrb[0].mxu0
    %v1256 = vadd.f32 %v1037, %v1255
    %v1257 = vpop.f32.mrb[0].mxu0
    %1258 = vmatprep.mubr.f32.mxu0 0.0
    %1259 = vmatmul.mubr.f32.gmra.mrb[0].mxu0 %v1015
    %v1260 = vpop.f32.mrb[0].mxu0
    %v1261 = vadd.f32 %v1037, %v1260
    %v1262 = vpop.f32.mrb[0].mxu0
    %1263 = vdwg.mxu0
    %1264 = vst [vmem:[%s7] sm:$0xff] %v1106
    %1265 = vst [vmem:[%s7 + $0x8] sm:$0xff] %v1111
    %1266 = vst [vmem:[%s7 + $0x10] sm:$0xff] %v1116
    %1267 = vst [vmem:[%s7 + $0x18] sm:$0xff] %v1121
    %1268 = vst [vmem:[%s7 + $0x20] sm:$0xff] %v1126
    %1269 = vst [vmem:[%s7 + $0x28] sm:$0xff] %v1131
    %1270 = vst [vmem:[%s7 + $0x30] sm:$0xff] %v1136
    %1271 = vst [vmem:[%s7 + $0x38] sm:$0xff] %v1141
    %1272 = vst [vmem:[%s7 + $0x40] sm:$0xff] %v1146
    %1273 = vst [vmem:[%s7 + $0x48] sm:$0xff] %v1151
    %1274 = vst [vmem:[%s7 + $0x50] sm:$0xff] %v1156
    %1275 = vst [vmem:[%s7 + $0x58] sm:$0xff] %v1161
    %1276 = vst [vmem:[%s7 + $0x60] sm:$0xff] %v1166
    %1277 = vst [vmem:[%s7 + $0x68] sm:$0xff] %v1171
    %1278 = vst [vmem:[%s7 + $0x70] sm:$0xff] %v1176
    %1279 = vst [vmem:[%s7 + $0x78] sm:$0xff] %v1181
    %1280 = vst [vmem:[%s7 + $0x80] sm:$0xff] %v1186
    %1281 = vst [vmem:[%s7 + $0x88] sm:$0xff] %v1191
    %1282 = vst [vmem:[%s7 + $0x90] sm:$0xff] %v1196
    %1283 = vst [vmem:[%s7 + $0x98] sm:$0xff] %v1201
    %1284 = vst [vmem:[%s7 + $0xa0] sm:$0xff] %v1206
    %1285 = vst [vmem:[%s7 + $0xa8] sm:$0xff] %v1211
    %1286 = vst [vmem:[%s7 + $0xb0] sm:$0xff] %v1216
    %1287 = vst [vmem:[%s7 + $0xb8] sm:$0xff] %v1221
    %1288 = vst [vmem:[%s7 + $0xc0] sm:$0xff] %v1226
    %1289 = vst [vmem:[%s7 + $0xc8] sm:$0xff] %v1231
    %1290 = vst [vmem:[%s7 + $0xd0] sm:$0xff] %v1236
    %1291 = vst [vmem:[%s7 + $0xd8] sm:$0xff] %v1241
    %1292 = vst [vmem:[%s7 + $0xe0] sm:$0xff] %v1246
    %1293 = vst [vmem:[%s7 + $0xe8] sm:$0xff] %v1251
    %1294 = vst [vmem:[%s7 + $0xf0] sm:$0xff] %v1256
    %1295 = vst [vmem:[%s7 + $0xf8] sm:$0xff] %v1261
    // Predicated region
    $region34: #{ffnn_forward.1} parent=1 // pred_check
      _
    $region35: #{ffnn_forward.1} parent=1 // pred_check_branch
      %1297 = sbr.rel (0) target = $region37
    $region36: #{ffnn_forward.1} parent=1 // pred_region
      _
    $region37: #{ffnn_forward.1} parent=1 // pred_fallthru
      _
    // Predicated region
    $region38: #{ffnn_forward.1} parent=1 // pred_check
      _
    $region39: #{ffnn_forward.1} parent=1 // pred_check_branch
      %1299 = sbr.rel (0) target = $region41
    $region40: #{ffnn_forward.1} parent=1 // pred_region
      _
    $region41: #{ffnn_forward.1} parent=1 // pred_fallthru
      _
    %1300 = vsyncpa [#allocation3], 1

</llo_original>
